<compile_context>
chip_gen: v6e
topology: v6e:2x2x1
jax: 0.10.0
libtpu: 0.0.40
codegen_flags: <defaults>
</compile_context>

<pallas_src>
import jax
import jax.numpy as jnp
from jax.experimental import pallas as pl
from jax.experimental.pallas import tpu as pltpu

IN_FEATURES = 768
OUT_FEATURES = 2
DEFAULT_TILE_B = 2048   # 2048 x 768 f32 = 6 MiB / tile, 12 MiB double-buffered.


def _round_up(n, m):
    return ((n + m - 1) // m) * m


def _cdiv(a, b):
    return (a + b - 1) // b


def _choose_tile_b(B, max_tile=DEFAULT_TILE_B):
    """Balanced, sublane-aligned batch tile.

    - B < 16: one full-extent block (block dim == array dim, so no (8) rule).
    - otherwise: at least 2 grid steps (both v7x TensorCores), tiles balanced
      so the ragged tail wastes < 8 rows instead of up to tile_b-1."""
    if B < 16:
        return B
    n_tiles = max(2, _cdiv(B, max_tile))
    return min(max_tile, _round_up(_cdiv(B, n_tiles), 8))


def classification_kernel(x_ref, w_ref, b_ref, o_ref):
    # x_ref: (tile_b, 768) VMEM, w_ref: (768, 2) VMEM, b_ref: (1, 2) VMEM.
    # Cast operands to bf16 for a guaranteed single MXU pass; accumulate in f32.
    x = x_ref[...].astype(jnp.bfloat16)
    w = w_ref[...].astype(jnp.bfloat16)
    y = jnp.dot(x, w, preferred_element_type=jnp.float32) + b_ref[...]
    # ReLU on the VPU; Dropout(p=0.0) is the identity.
    o_ref[...] = jnp.maximum(y, 0.0).astype(o_ref.dtype)


def prepare_params(weight, bias):
    """One-time parameter prep: (2, 768) W, (2,) b -> (768, 2) W^T, (1, 2) b."""
    return weight.T, bias.reshape(1, OUT_FEATURES)


def classification_forward(x, w_t, b2d, *, max_tile_b=DEFAULT_TILE_B):
    """x: (B, 768) f32, w_t: (768, 2) f32, b2d: (1, 2) f32 -> (B, 2) f32."""
    B = x.shape[0]
    tile_b = _choose_tile_b(B, max_tile_b)
    grid = (_cdiv(B, tile_b),)

    cost = pl.CostEstimate(
        flops=2 * B * IN_FEATURES * OUT_FEATURES,
        transcendentals=0,
        bytes_accessed=(B * IN_FEATURES * 4 + B * OUT_FEATURES * 4
                        + IN_FEATURES * OUT_FEATURES * 4 + OUT_FEATURES * 4),
    )

    return pl.pallas_call(
        classification_kernel,
        out_shape=jax.ShapeDtypeStruct((B, OUT_FEATURES), jnp.float32),
        grid=grid,
        in_specs=[
            pl.BlockSpec((tile_b, IN_FEATURES), lambda i: (i, 0)),
            pl.BlockSpec((IN_FEATURES, OUT_FEATURES), lambda i: (0, 0)),
            pl.BlockSpec((1, OUT_FEATURES), lambda i: (0, 0)),
        ],
        out_specs=pl.BlockSpec((tile_b, OUT_FEATURES), lambda i: (i, 0)),
        compiler_params=pltpu.CompilerParams(
            dimension_semantics=("parallel",),
            vmem_limit_bytes=32 * 1024 * 1024,
        ),
        cost_estimate=cost,
    )(x, w_t, b2d)


if __name__ == "__main__":
    key = jax.random.PRNGKey(0)
    kx, kw, kb, kx2 = jax.random.split(key, 4)

    # Deterministic parameter init (nn.Linear shapes: W (2, 768), b (2,)).
    bound = 1.0 / (IN_FEATURES ** 0.5)
    weight = jax.random.uniform(
        kw, (OUT_FEATURES, IN_FEATURES), minval=-bound, maxval=bound,
        dtype=jnp.float32)
    bias = jax.random.uniform(
        kb, (OUT_FEATURES,), minval=-bound, maxval=bound, dtype=jnp.float32)

    # Hoisted parameter prep (done once, not per forward call).
    w_t, b2d = prepare_params(weight, bias)

    def ref_fn(xv):
        return jnp.maximum(xv @ weight.T + bias, 0.0)

    # Small batch (single full-extent block, latency path).
    B = 4
    x = jax.random.normal(kx, (B, IN_FEATURES), dtype=jnp.float32)
    out = jax.block_until_ready(classification_forward(x, w_t, b2d))
    assert out.shape == (B, OUT_FEATURES)
    # bf16 MXU operands + f32 accumulate -> loosened tolerance vs f32 reference.
    assert jnp.allclose(out, ref_fn(x), atol=3e-2, rtol=3e-2)

    # Non-multiple-of-tile batch: 2 grid steps, ragged last block, no pad copy.
    B2 = 130
    x2 = jax.random.normal(kx2, (B2, IN_FEATURES), dtype=jnp.float32)
    out2 = jax.block_until_ready(classification_forward(x2, w_t, b2d))
    assert out2.shape == (B2, OUT_FEATURES)
    assert jnp.allclose(out2, ref_fn(x2), atol=3e-2, rtol=3e-2)

    print("KERNEL_OK")
</pallas_src>

<mosaic_0001>
module attributes {stable_mosaic.version = 11 : i64} {
  func.func @classification_kernel(%arg0: i32, %arg1: memref<4x768xf32, #tpu.memory_space<vmem>>, %arg2: memref<768x2xf32, #tpu.memory_space<vmem>>, %arg3: memref<1x2xf32, #tpu.memory_space<vmem>>, %arg4: memref<4x2xf32, #tpu.memory_space<vmem>>) attributes {dimension_semantics = [#tpu.dimension_semantics<parallel>], iteration_bounds = array<i64: 1>, scalar_prefetch = 0 : i64, scratch_operands = 0 : i64, tpu.core_type = #tpu.core_type<tc>, window_params = [{transform_indices = @transform_0, window_bounds = array<i64: 4, 768>}, {pipeline_mode = #tpu.pipeline_mode<synchronous>, transform_indices = @transform_1, window_bounds = array<i64: 768, 2>}, {pipeline_mode = #tpu.pipeline_mode<synchronous>, transform_indices = @transform_2, window_bounds = array<i64: 1, 2>}, {transform_indices = @transform_3, window_bounds = array<i64: 4, 2>}]} {
    %c0 = arith.constant 0 : index
    %c0_0 = arith.constant 0 : index
    %0 = vector.load %arg1[%c0, %c0_0] : memref<4x768xf32, #tpu.memory_space<vmem>>, vector<4x768xf32>
    %1 = arith.truncf %0 : vector<4x768xf32> to vector<4x768xbf16>
    %c0_1 = arith.constant 0 : index
    %c0_2 = arith.constant 0 : index
    %2 = vector.load %arg2[%c0_1, %c0_2] : memref<768x2xf32, #tpu.memory_space<vmem>>, vector<768x2xf32>
    %3 = arith.truncf %2 : vector<768x2xf32> to vector<768x2xbf16>
    %cst = arith.constant dense<0.000000e+00> : vector<4x2xf32>
    %4 = tpu.matmul %1, %3, %cst {dimension_numbers = #tpu.dot_dimension_numbers<[1], [0], [0], [1], [0, 0, 1, 1], [], []>} : vector<4x768xbf16>, vector<768x2xbf16>, vector<4x2xf32> -> vector<4x2xf32>
    %c0_3 = arith.constant 0 : index
    %c0_4 = arith.constant 0 : index
    %5 = vector.load %arg3[%c0_3, %c0_4] : memref<1x2xf32, #tpu.memory_space<vmem>>, vector<1x2xf32>
    %6 = vector.broadcast %5 : vector<1x2xf32> to vector<4x2xf32>
    %7 = arith.addf %4, %6 : vector<4x2xf32>
    %cst_5 = arith.constant 0.000000e+00 : f32
    %8 = vector.broadcast %cst_5 : f32 to vector<4x2xf32>
    %9 = arith.maximumf %7, %8 : vector<4x2xf32>
    %c0_6 = arith.constant 0 : index
    %c0_7 = arith.constant 0 : index
    %10 = vector.load %arg4[%c0_6, %c0_7] : memref<4x2xf32, #tpu.memory_space<vmem>>, vector<4x2xf32>
    tpu.vector_store %arg4[%c0_6, %c0_7], %9 {strides = array<i32>} : memref<4x2xf32, #tpu.memory_space<vmem>>, vector<4x2xf32>,
    return
  }
  func.func @transform_0(%arg0: i32) -> (i32, i32) {
    %c0_i32 = arith.constant 0 : i32
    %c0_i32_0 = arith.constant 0 : i32
    return %arg0, %c0_i32 : i32, i32
  }
  func.func @transform_1(%arg0: i32) -> (i32, i32) {
    %c0_i32 = arith.constant 0 : i32
    %c0_i32_0 = arith.constant 0 : i32
    %c0_i32_1 = arith.constant 0 : i32
    return %c0_i32, %c0_i32_0 : i32, i32
  }
  func.func @transform_2(%arg0: i32) -> (i32, i32) {
    %c0_i32 = arith.constant 0 : i32
    %c0_i32_0 = arith.constant 0 : i32
    %c0_i32_1 = arith.constant 0 : i32
    return %c0_i32, %c0_i32_0 : i32, i32
  }
  func.func @transform_3(%arg0: i32) -> (i32, i32) {
    %c0_i32 = arith.constant 0 : i32
    %c0_i32_0 = arith.constant 0 : i32
    return %arg0, %c0_i32 : i32, i32
  }
}

</mosaic_0001>

<llo_original>
// kernel: tpu_custom_call.1
$region0: #{tpu_custom_call.1}
  #allocation0 [shape = 'u32[]', space=smem, size = 0x4, offset = 0x4, fixed_abs, tag = 'smem constant byte address 0x4 - core index']
  #allocation1 [shape = 'u32[144,128]{1,0:T(1,128)}', space=vmem, size = 0x12000, scoped, tag = 'internal scratch']
  %s0 = inlined_call_operand.vmem [shape: f32[4,768], index: 0, kind: input, shape index: {}]
  %s1 = inlined_call_operand.vmem [shape: f32[768,2], index: 1, kind: input, shape index: {}]
  %s2 = inlined_call_operand.vmem [shape: f32[1,2], index: 2, kind: input, shape index: {}]
  %s3 = inlined_call_operand.vmem [shape: f32[4,2], index: 3, kind: output, shape index: {}]
  %s4 = sld [smem:[#allocation0]]
  $region22: #{tpu_custom_call.1} parent=0
    _
  %s6 = ssub.s32 1, %s4
  %s7 = scalar_select 0, %s6, %s4
  // Predicated region
  $region2: #{tpu_custom_call.1} parent=0 // pred_check
    _
  $region3: #{tpu_custom_call.1} parent=0 // pred_check_branch
    %9 = sbr.rel (0) target = $region5
  $region4: #{tpu_custom_call.1} parent=0 // pred_region
    _
  $region5: #{tpu_custom_call.1} parent=0 // pred_fallthru
    _
  // Predicated region
  $region6: #{tpu_custom_call.1} parent=0 // pred_check
    _
  $region7: #{tpu_custom_call.1} parent=0 // pred_check_branch
    %11 = sbr.rel (0) target = $region9
  $region8: #{tpu_custom_call.1} parent=0 // pred_region
    _
  $region9: #{tpu_custom_call.1} parent=0 // pred_fallthru
    _
  // Predicated region
  $region10: #{tpu_custom_call.1} parent=0 // pred_check
    _
  $region11: #{tpu_custom_call.1} parent=0 // pred_check_branch
    %13 = sbr.rel (0) target = $region13
  $region12: #{tpu_custom_call.1} parent=0 // pred_region
    _
  $region13: #{tpu_custom_call.1} parent=0 // pred_fallthru
    _
  %v15 = vld [vmem:[%s0] sm:$0xff]
  %v16 = vld [vmem:[%s0 + $0x8] sm:$0xff]
  %v17 = vld [vmem:[%s0 + $0x10] sm:$0xff]
  %v21 = vcombine.high %v15, %v15
  %v22 = vcombine.high %v16, %v16
  %v23 = vcombine.high %v17, %v17
  %v27 = vpack.c.bf16 %v15, %v15
  %v28 = vpack.c.bf16 %v21, %v21
  %v29 = vpack.c.bf16 %v16, %v16
  %v30 = vpack.c.bf16 %v22, %v22
  %v31 = vpack.c.bf16 %v17, %v17
  %v32 = vpack.c.bf16 %v23, %v23
  %v33 = vld [vmem:[%s1] sm:$0xff]
  %v34 = vld [vmem:[%s1 + $0x8] sm:$0xff]
  %v35 = vld [vmem:[%s1 + $0x10] sm:$0xff]
  %v36 = vld [vmem:[%s1 + $0x18] sm:$0xff]
  %v37 = vld [vmem:[%s1 + $0x20] sm:$0xff]
  %v38 = vld [vmem:[%s1 + $0x28] sm:$0xff]
  %v39 = vld [vmem:[%s1 + $0x30] sm:$0xff]
  %v40 = vld [vmem:[%s1 + $0x38] sm:$0xff]
  %v41 = vld [vmem:[%s1 + $0x40] sm:$0xff]
  %v42 = vld [vmem:[%s1 + $0x48] sm:$0xff]
  %v43 = vld [vmem:[%s1 + $0x50] sm:$0xff]
  %v44 = vld [vmem:[%s1 + $0x58] sm:$0xff]
  %v45 = vld [vmem:[%s1 + $0x60] sm:$0xff]
  %v46 = vld [vmem:[%s1 + $0x68] sm:$0xff]
  %v47 = vld [vmem:[%s1 + $0x70] sm:$0xff]
  %v48 = vld [vmem:[%s1 + $0x78] sm:$0xff]
  %v49 = vld [vmem:[%s1 + $0x80] sm:$0xff]
  %v50 = vld [vmem:[%s1 + $0x88] sm:$0xff]
  %v51 = vld [vmem:[%s1 + $0x90] sm:$0xff]
  %v52 = vld [vmem:[%s1 + $0x98] sm:$0xff]
  %v53 = vld [vmem:[%s1 + $0xa0] sm:$0xff]
  %v54 = vld [vmem:[%s1 + $0xa8] sm:$0xff]
  %v55 = vld [vmem:[%s1 + $0xb0] sm:$0xff]
  %v56 = vld [vmem:[%s1 + $0xb8] sm:$0xff]
  %v57 = vld [vmem:[%s1 + $0xc0] sm:$0xff]
  %v58 = vld [vmem:[%s1 + $0xc8] sm:$0xff]
  %v59 = vld [vmem:[%s1 + $0xd0] sm:$0xff]
  %v60 = vld [vmem:[%s1 + $0xd8] sm:$0xff]
  %v61 = vld [vmem:[%s1 + $0xe0] sm:$0xff]
  %v62 = vld [vmem:[%s1 + $0xe8] sm:$0xff]
  %v63 = vld [vmem:[%s1 + $0xf0] sm:$0xff]
  %v64 = vld [vmem:[%s1 + $0xf8] sm:$0xff]
  %v65 = vld [vmem:[%s1 + $0x100] sm:$0xff]
  %v66 = vld [vmem:[%s1 + $0x108] sm:$0xff]
  %v67 = vld [vmem:[%s1 + $0x110] sm:$0xff]
  %v68 = vld [vmem:[%s1 + $0x118] sm:$0xff]
  %v69 = vld [vmem:[%s1 + $0x120] sm:$0xff]
  %v70 = vld [vmem:[%s1 + $0x128] sm:$0xff]
  %v71 = vld [vmem:[%s1 + $0x130] sm:$0xff]
  %v72 = vld [vmem:[%s1 + $0x138] sm:$0xff]
  %v73 = vld [vmem:[%s1 + $0x140] sm:$0xff]
  %v74 = vld [vmem:[%s1 + $0x148] sm:$0xff]
  %v75 = vld [vmem:[%s1 + $0x150] sm:$0xff]
  %v76 = vld [vmem:[%s1 + $0x158] sm:$0xff]
  %v77 = vld [vmem:[%s1 + $0x160] sm:$0xff]
  %v78 = vld [vmem:[%s1 + $0x168] sm:$0xff]
  %v79 = vld [vmem:[%s1 + $0x170] sm:$0xff]
  %v80 = vld [vmem:[%s1 + $0x178] sm:$0xff]
  %v81 = vld [vmem:[%s1 + $0x180] sm:$0xff]
  %v82 = vld [vmem:[%s1 + $0x188] sm:$0xff]
  %v83 = vld [vmem:[%s1 + $0x190] sm:$0xff]
  %v84 = vld [vmem:[%s1 + $0x198] sm:$0xff]
  %v85 = vld [vmem:[%s1 + $0x1a0] sm:$0xff]
  %v86 = vld [vmem:[%s1 + $0x1a8] sm:$0xff]
  %v87 = vld [vmem:[%s1 + $0x1b0] sm:$0xff]
  %v88 = vld [vmem:[%s1 + $0x1b8] sm:$0xff]
  %v89 = vld [vmem:[%s1 + $0x1c0] sm:$0xff]
  %v90 = vld [vmem:[%s1 + $0x1c8] sm:$0xff]
  %v91 = vld [vmem:[%s1 + $0x1d0] sm:$0xff]
  %v92 = vld [vmem:[%s1 + $0x1d8] sm:$0xff]
  %v93 = vld [vmem:[%s1 + $0x1e0] sm:$0xff]
  %v94 = vld [vmem:[%s1 + $0x1e8] sm:$0xff]
  %v95 = vld [vmem:[%s1 + $0x1f0] sm:$0xff]
  %v96 = vld [vmem:[%s1 + $0x1f8] sm:$0xff]
  %v97 = vld [vmem:[%s1 + $0x200] sm:$0xff]
  %v98 = vld [vmem:[%s1 + $0x208] sm:$0xff]
  %v99 = vld [vmem:[%s1 + $0x210] sm:$0xff]
  %v100 = vld [vmem:[%s1 + $0x218] sm:$0xff]
  %v101 = vld [vmem:[%s1 + $0x220] sm:$0xff]
  %v102 = vld [vmem:[%s1 + $0x228] sm:$0xff]
  %v103 = vld [vmem:[%s1 + $0x230] sm:$0xff]
  %v104 = vld [vmem:[%s1 + $0x238] sm:$0xff]
  %v105 = vld [vmem:[%s1 + $0x240] sm:$0xff]
  %v106 = vld [vmem:[%s1 + $0x248] sm:$0xff]
  %v107 = vld [vmem:[%s1 + $0x250] sm:$0xff]
  %v108 = vld [vmem:[%s1 + $0x258] sm:$0xff]
  %v109 = vld [vmem:[%s1 + $0x260] sm:$0xff]
  %v110 = vld [vmem:[%s1 + $0x268] sm:$0xff]
  %v111 = vld [vmem:[%s1 + $0x270] sm:$0xff]
  %v112 = vld [vmem:[%s1 + $0x278] sm:$0xff]
  %v113 = vld [vmem:[%s1 + $0x280] sm:$0xff]
  %v114 = vld [vmem:[%s1 + $0x288] sm:$0xff]
  %v115 = vld [vmem:[%s1 + $0x290] sm:$0xff]
  %v116 = vld [vmem:[%s1 + $0x298] sm:$0xff]
  %v117 = vld [vmem:[%s1 + $0x2a0] sm:$0xff]
  %v118 = vld [vmem:[%s1 + $0x2a8] sm:$0xff]
  %v119 = vld [vmem:[%s1 + $0x2b0] sm:$0xff]
  %v120 = vld [vmem:[%s1 + $0x2b8] sm:$0xff]
  %v121 = vld [vmem:[%s1 + $0x2c0] sm:$0xff]
  %v122 = vld [vmem:[%s1 + $0x2c8] sm:$0xff]
  %v123 = vld [vmem:[%s1 + $0x2d0] sm:$0xff]
  %v124 = vld [vmem:[%s1 + $0x2d8] sm:$0xff]
  %v125 = vld [vmem:[%s1 + $0x2e0] sm:$0xff]
  %v126 = vld [vmem:[%s1 + $0x2e8] sm:$0xff]
  %v127 = vld [vmem:[%s1 + $0x2f0] sm:$0xff]
  %v128 = vld [vmem:[%s1 + $0x2f8] sm:$0xff]
  %v129 = vpack.c.bf16 %v34, %v33
  %v130 = vpack.c.bf16 %v36, %v35
  %v131 = vpack.c.bf16 %v38, %v37
  %v132 = vpack.c.bf16 %v40, %v39
  %v133 = vpack.c.bf16 %v42, %v41
  %v134 = vpack.c.bf16 %v44, %v43
  %v135 = vpack.c.bf16 %v46, %v45
  %v136 = vpack.c.bf16 %v48, %v47
  %v137 = vpack.c.bf16 %v50, %v49
  %v138 = vpack.c.bf16 %v52, %v51
  %v139 = vpack.c.bf16 %v54, %v53
  %v140 = vpack.c.bf16 %v56, %v55
  %v141 = vpack.c.bf16 %v58, %v57
  %v142 = vpack.c.bf16 %v60, %v59
  %v143 = vpack.c.bf16 %v62, %v61
  %v144 = vpack.c.bf16 %v64, %v63
  %v145 = vpack.c.bf16 %v66, %v65
  %v146 = vpack.c.bf16 %v68, %v67
  %v147 = vpack.c.bf16 %v70, %v69
  %v148 = vpack.c.bf16 %v72, %v71
  %v149 = vpack.c.bf16 %v74, %v73
  %v150 = vpack.c.bf16 %v76, %v75
  %v151 = vpack.c.bf16 %v78, %v77
  %v152 = vpack.c.bf16 %v80, %v79
  %v153 = vpack.c.bf16 %v82, %v81
  %v154 = vpack.c.bf16 %v84, %v83
  %v155 = vpack.c.bf16 %v86, %v85
  %v156 = vpack.c.bf16 %v88, %v87
  %v157 = vpack.c.bf16 %v90, %v89
  %v158 = vpack.c.bf16 %v92, %v91
  %v159 = vpack.c.bf16 %v94, %v93
  %v160 = vpack.c.bf16 %v96, %v95
  %v161 = vpack.c.bf16 %v98, %v97
  %v162 = vpack.c.bf16 %v100, %v99
  %v163 = vpack.c.bf16 %v102, %v101
  %v164 = vpack.c.bf16 %v104, %v103
  %v165 = vpack.c.bf16 %v106, %v105
  %v166 = vpack.c.bf16 %v108, %v107
  %v167 = vpack.c.bf16 %v110, %v109
  %v168 = vpack.c.bf16 %v112, %v111
  %v169 = vpack.c.bf16 %v114, %v113
  %v170 = vpack.c.bf16 %v116, %v115
  %v171 = vpack.c.bf16 %v118, %v117
  %v172 = vpack.c.bf16 %v120, %v119
  %v173 = vpack.c.bf16 %v122, %v121
  %v174 = vpack.c.bf16 %v124, %v123
  %v175 = vpack.c.bf16 %v126, %v125
  %v176 = vpack.c.bf16 %v128, %v127
  %v177 = vld [vmem:[%s2] sm:$0x1]
  %v179 = vlaneseq
  %v180 = vshrl.u32 %v179, 7
  %v181 = vsub.s32 0, %v180
  %v182 = vrot.slane %v177, %v181
  %184 = vmatprep.subr.bf16.mxu0 0
  %185 = vmatpush1.bf16.msra.mxu0 %v136
  %186 = vmatprep.subr.bf16.mxu0 0
  %187 = vmatpush1.bf16.msra.mxu0 %v135
  %188 = vmatprep.subr.bf16.mxu0 0
  %189 = vmatpush1.bf16.msra.mxu0 %v134
  %190 = vmatprep.subr.bf16.mxu0 0
  %191 = vmatpush1.bf16.msra.mxu0 %v133
  %192 = vmatprep.subr.bf16.mxu0 0
  %193 = vmatpush1.bf16.msra.mxu0 %v132
  %194 = vmatprep.subr.bf16.mxu0 0
  %195 = vmatpush1.bf16.msra.mxu0 %v131
  %196 = vmatprep.subr.bf16.mxu0 0
  %197 = vmatpush1.bf16.msra.mxu0 %v130
  %198 = vmatprep.subr.bf16.mxu0 0
  %199 = vmatpush1.bf16.msra.mxu0 %v129
  %200 = vmatprep.subr.bf16.mxu0 0
  %201 = vmatpush2.bf16.msra.mxu0 %v144
  %202 = vmatprep.subr.bf16.mxu0 0
  %203 = vmatpush2.bf16.msra.mxu0 %v143
  %204 = vmatprep.subr.bf16.mxu0 0
  %205 = vmatpush2.bf16.msra.mxu0 %v142
  %206 = vmatprep.subr.bf16.mxu0 0
  %207 = vmatpush2.bf16.msra.mxu0 %v141
  %208 = vmatprep.subr.bf16.mxu0 0
  %209 = vmatpush2.bf16.msra.mxu0 %v140
  %210 = vmatprep.subr.bf16.mxu0 0
  %211 = vmatpush2.bf16.msra.mxu0 %v139
  %212 = vmatprep.subr.bf16.mxu0 0
  %213 = vmatpush2.bf16.msra.mxu0 %v138
  %214 = vmatprep.subr.bf16.mxu0 0
  %215 = vmatpush2.bf16.msra.mxu0 %v137
  %216 = vmatprep.mubr.bf16.mxu0 %v28
  %217 = vmatmul.mubr.bf16.gmra.mxu0 %v27
  %v218 = vpop.f32.mrf.mxu0
  %v219 = vadd.f32 %v182, %v218
  %v220 = vpop.f32.mrf.mxu0
  %v221 = vpop.f32.mrf.mxu0
  %v222 = vpop.f32.mrf.mxu0
  %223 = vdwg.mxu0
  %224 = vmatprep.subr.bf16.mxu0 0
  %225 = vmatpush1.bf16.msra.mxu0 %v152
  %226 = vmatprep.subr.bf16.mxu0 0
  %227 = vmatpush1.bf16.msra.mxu0 %v151
  %228 = vmatprep.subr.bf16.mxu0 0
  %229 = vmatpush1.bf16.msra.mxu0 %v150
  %230 = vmatprep.subr.bf16.mxu0 0
  %231 = vmatpush1.bf16.msra.mxu0 %v149
  %232 = vmatprep.subr.bf16.mxu0 0
  %233 = vmatpush1.bf16.msra.mxu0 %v148
  %234 = vmatprep.subr.bf16.mxu0 0
  %235 = vmatpush1.bf16.msra.mxu0 %v147
  %236 = vmatprep.subr.bf16.mxu0 0
  %237 = vmatpush1.bf16.msra.mxu0 %v146
  %238 = vmatprep.subr.bf16.mxu0 0
  %239 = vmatpush1.bf16.msra.mxu0 %v145
  %240 = vmatprep.subr.bf16.mxu0 0
  %241 = vmatpush2.bf16.msra.mxu0 %v160
  %242 = vmatprep.subr.bf16.mxu0 0
  %243 = vmatpush2.bf16.msra.mxu0 %v159
  %244 = vmatprep.subr.bf16.mxu0 0
  %245 = vmatpush2.bf16.msra.mxu0 %v158
  %246 = vmatprep.subr.bf16.mxu0 0
  %247 = vmatpush2.bf16.msra.mxu0 %v157
  %248 = vmatprep.subr.bf16.mxu0 0
  %249 = vmatpush2.bf16.msra.mxu0 %v156
  %250 = vmatprep.subr.bf16.mxu0 0
  %251 = vmatpush2.bf16.msra.mxu0 %v155
  %252 = vmatprep.subr.bf16.mxu0 0
  %253 = vmatpush2.bf16.msra.mxu0 %v154
  %254 = vmatprep.subr.bf16.mxu0 0
  %255 = vmatpush2.bf16.msra.mxu0 %v153
  %256 = vmatprep.mubr.bf16.mxu0 %v30
  %257 = vmatmul.mubr.bf16.gmra.mxu0 %v29
  %v258 = vpop.f32.mrf.mxu0
  %v259 = vadd.f32 %v219, %v258
  %v260 = vpop.f32.mrf.mxu0
  %v261 = vpop.f32.mrf.mxu0
  %v262 = vpop.f32.mrf.mxu0
  %263 = vdwg.mxu0
  %264 = vmatprep.subr.bf16.mxu0 0
  %265 = vmatpush1.bf16.msra.mxu0 %v168
  %266 = vmatprep.subr.bf16.mxu0 0
  %267 = vmatpush1.bf16.msra.mxu0 %v167
  %268 = vmatprep.subr.bf16.mxu0 0
  %269 = vmatpush1.bf16.msra.mxu0 %v166
  %270 = vmatprep.subr.bf16.mxu0 0
  %271 = vmatpush1.bf16.msra.mxu0 %v165
  %272 = vmatprep.subr.bf16.mxu0 0
  %273 = vmatpush1.bf16.msra.mxu0 %v164
  %274 = vmatprep.subr.bf16.mxu0 0
  %275 = vmatpush1.bf16.msra.mxu0 %v163
  %276 = vmatprep.subr.bf16.mxu0 0
  %277 = vmatpush1.bf16.msra.mxu0 %v162
  %278 = vmatprep.subr.bf16.mxu0 0
  %279 = vmatpush1.bf16.msra.mxu0 %v161
  %280 = vmatprep.subr.bf16.mxu0 0
  %281 = vmatpush2.bf16.msra.mxu0 %v176
  %282 = vmatprep.subr.bf16.mxu0 0
  %283 = vmatpush2.bf16.msra.mxu0 %v175
  %284 = vmatprep.subr.bf16.mxu0 0
  %285 = vmatpush2.bf16.msra.mxu0 %v174
  %286 = vmatprep.subr.bf16.mxu0 0
  %287 = vmatpush2.bf16.msra.mxu0 %v173
  %288 = vmatprep.subr.bf16.mxu0 0
  %289 = vmatpush2.bf16.msra.mxu0 %v172
  %290 = vmatprep.subr.bf16.mxu0 0
  %291 = vmatpush2.bf16.msra.mxu0 %v171
  %292 = vmatprep.subr.bf16.mxu0 0
  %293 = vmatpush2.bf16.msra.mxu0 %v170
  %294 = vmatprep.subr.bf16.mxu0 0
  %295 = vmatpush2.bf16.msra.mxu0 %v169
  %296 = vmatprep.mubr.bf16.mxu0 %v32
  %297 = vmatmul.mubr.bf16.gmra.mxu0 %v31
  %v298 = vpop.f32.mrf.mxu0
  %v299 = vadd.f32 %v259, %v298
  %v300 = vpop.f32.mrf.mxu0
  %v301 = vpop.f32.mrf.mxu0
  %v302 = vpop.f32.mrf.mxu0
  %303 = vdwg.mxu0
  %v304 = vmax.f32 %v299, 0.0
  %vm305 = vcmask 11264
  %306 = vst.msk [vmem:[%s3] sm:$0xf] %vm305, %v304
  // Predicated region
  $region14: #{tpu_custom_call.1} parent=0 // pred_check
    _
  $region15: #{tpu_custom_call.1} parent=0 // pred_check_branch
    %308 = sbr.rel (0) target = $region17
  $region16: #{tpu_custom_call.1} parent=0 // pred_region
    _
  $region17: #{tpu_custom_call.1} parent=0 // pred_fallthru
    _
  // Predicated region
  $region18: #{tpu_custom_call.1} parent=0 // pred_check
    _
  $region19: #{tpu_custom_call.1} parent=0 // pred_check_branch
    %310 = sbr.rel (0) target = $region21
  $region20: #{tpu_custom_call.1} parent=0 // pred_region
    _
  $region21: #{tpu_custom_call.1} parent=0 // pred_fallthru
    _

</llo_original>
